<compile_context>
chip_gen: v6e
topology: v6e:2x2x1
jax: 0.10.0
libtpu: 0.0.40
codegen_flags: <defaults>
</compile_context>

<pallas_src>
import functools

import jax
import jax.numpy as jnp
from jax import lax
from jax.experimental import pallas as pl
from jax.experimental.pallas import tpu as pltpu

# murmur3 fmix32 constants, as signed 32-bit Python ints.
_MIX1 = -2048144789     # 0x85EBCA6B
_MIX2 = -1028477387     # 0xC2B2AE35

_MAX_TILE_BYTES = 4 << 20      # ~4 MiB per tile (x4 live buffers ~= 16 MiB VMEM)
_SPLIT_FLOOR_BYTES = 1 << 20   # only split the grid if tiles stay >= ~1 MiB


def _group_ignored(ids):
    """Sort/unique ignored ids and merge consecutive runs into (lo, hi) ranges."""
    ids = sorted(set(int(i) for i in ids))
    ranges = []
    for i in ids:
        if ranges and i == ranges[-1][1] + 1:
            ranges[-1] = (ranges[-1][0], i)
        else:
            ranges.append((i, i))
    return tuple(ranges)


def _mix_seed(seed):
    """Full fmix32 of the seed (runs once, outside the kernel)."""
    s = jnp.asarray(seed).astype(jnp.uint32)
    s = s ^ (s >> 16)
    s = s * jnp.uint32(0x85EBCA6B)
    s = s ^ (s >> 13)
    s = s * jnp.uint32(0xC2B2AE35)
    s = s ^ (s >> 16)
    return s.astype(jnp.int32)    # bit-preserving; SMEM scalar is int32


def _choose_flat_layout(total, max_lanes=8192):
    """(rows, lanes) for a lane-dense flattened view, or None if impossible."""
    if total % 128 != 0:
        return None
    # Largest power-of-two lane width (<= max_lanes) dividing total.
    lanes = 128
    while lanes < max_lanes and total % (lanes * 2) == 0:
        lanes *= 2
    # Prefer the largest lane width whose row count is a multiple of 8
    # (clean (8,128) blocks and a splittable grid).
    best = lanes
    while lanes > 128 and (total // lanes) % 8 != 0:
        lanes //= 2
    if (total // lanes) % 8 != 0:
        lanes = best
    return total // lanes, lanes


def _pick_row_tile(rows, row_bytes):
    """Row-tile: multiple of 8 (or full rows), <= ~4 MiB, prefer a >=2-step grid."""
    cands = [d for d in range(8, rows + 1, 8) if rows % d == 0]
    if rows not in cands:
        cands.append(rows)
    fitting = [d for d in cands if d * row_bytes <= _MAX_TILE_BYTES]
    if not fitting:
        return 8 if rows % 8 == 0 else rows   # degenerate (huge rows)
    best = max(fitting)
    # v7x has 2 TensorCores: prefer >= 2 grid steps if tiles stay big enough.
    split = [d for d in fitting
             if rows // d >= 2 and d * row_bytes >= _SPLIT_FLOOR_BYTES]
    if rows // best < 2 and split:
        best = max(split)
    return best


def _text_masking_kernel(seed_ref, seq_ref, out_ref, *,
                         threshold_24, mask_token_id, ignore_ranges,
                         row_stride, lane_shift):
    seq = seq_ref[...]
    tr, tc = seq.shape

    # ---- scalar unit: per-tile base offset (global element index of [0,0]) ----
    base = pl.program_id(0) * tr * jnp.int32(row_stride) + pl.program_id(1) * tc
    sd = seed_ref[0]                       # pre-mixed seed (wrapper-side fmix32)

    # ---- vector index math: global linear element index (tiling-invariant) ----
    irow = lax.broadcasted_iota(jnp.int32, (tr, tc), 0)
    icol = lax.broadcasted_iota(jnp.int32, (tr, tc), 1)
    if lane_shift is not None:             # row stride is a power of two -> shift
        rowterm = irow << lane_shift
    else:
        rowterm = irow * jnp.int32(row_stride)
    x = rowterm + icol + base

    # ---- 2-round integer hash (murmur-style); seed XOR'd after round 1 so
    #      different seeds are not shifted copies of the same stream. ----
    x = x ^ lax.shift_right_logical(x, jnp.int32(16))
    x = x * jnp.int32(_MIX1)
    x = x ^ sd
    x = x ^ lax.shift_right_logical(x, jnp.int32(13))
    x = x * jnp.int32(_MIX2)
    # Top 24 bits of the final product (best avalanche), uniform in [0, 2^24).
    rand24 = lax.shift_right_logical(x, jnp.int32(8))

    mask = rand24 < jnp.int32(threshold_24)

    # Fold ignored-id checks into the mask; consecutive ids become one
    # unsigned range check.
    for lo, hi in ignore_ranges:
        if lo == hi:
            mask = mask & (seq != lo)
        elif seq.dtype == jnp.int32:
            d = pltpu.bitcast(seq - jnp.int32(lo), jnp.uint32)
            mask = mask & (d > jnp.uint32(hi - lo))
        else:
            mask = mask & ((seq < lo) | (seq > hi))

    out_ref[...] = jnp.where(mask, jnp.asarray(mask_token_id, seq.dtype), seq)


def text_masking(seq, seed, *, mask_prob, mask_token_id,
                 mask_ignored_ids=(), training=True):
    """JAX/Pallas equivalent of TextMasking.forward."""
    if (not training) or mask_prob == 0:
        return seq

    B, S = seq.shape
    total = B * S
    assert total < (1 << 32), "linear element index must fit 32 bits"
    itemsize = jnp.dtype(seq.dtype).itemsize

    threshold_24 = min(int(round(float(mask_prob) * (1 << 24))), 1 << 24)
    ignore_ranges = _group_ignored(mask_ignored_ids)

    flat = _choose_flat_layout(total)
    if flat is not None:
        # Lane-dense flattened slab: (R, L), L power-of-two multiple of 128.
        R, L = flat
        x = seq.reshape(R, L)
        TR = _pick_row_tile(R, L * itemsize)
        TC = L
        row_stride = L
        lane_shift = L.bit_length() - 1
        grid = (R // TR, 1)
    else:
        # Fallback: S is not a multiple of 128 -> block spans the full S.
        x = seq
        TC = S
        TR = _pick_row_tile(B, S * itemsize)
        row_stride = S
        lane_shift = None
        grid = (B // TR, 1)

    kernel = functools.partial(
        _text_masking_kernel,
        threshold_24=threshold_24,
        mask_token_id=int(mask_token_id),
        ignore_ranges=ignore_ranges,
        row_stride=row_stride,
        lane_shift=lane_shift,
    )

    seed_smem = _mix_seed(seed).reshape(1)

    out = pl.pallas_call(
        kernel,
        out_shape=jax.ShapeDtypeStruct(x.shape, x.dtype),
        grid_spec=pltpu.PrefetchScalarGridSpec(
            num_scalar_prefetch=1,                      # seed lands in SMEM
            grid=grid,
            in_specs=[pl.BlockSpec((TR, TC), lambda i, j, s_ref: (i, j))],
            out_specs=pl.BlockSpec((TR, TC), lambda i, j, s_ref: (i, j)),
        ),
        compiler_params=pltpu.CompilerParams(
            dimension_semantics=("parallel", "parallel"),
            vmem_limit_bytes=32 * 1024 * 1024,          # 4 MiB tiles x 4 buffers + headroom
        ),
    )(seed_smem, x)

    return out.reshape(B, S)


if __name__ == "__main__":
    MASK_PROB = 0.25
    MASK_TOKEN_ID = 103                # e.g. BERT [MASK]
    MASK_IGNORED_IDS = [0, 101, 102]   # pad / cls / sep

    key = jax.random.PRNGKey(0)
    k1, k2 = jax.random.split(key)

    # Case 1: lane-dense flattened path (B*S multiple of 128).
    B, S, VOCAB = 16, 384, 1000
    seq = jax.random.randint(k1, (B, S), minval=0, maxval=VOCAB, dtype=jnp.int32)
    seq = seq.at[:, 0].set(101).at[:, -1].set(102).at[:, 1].set(0)

    out = text_masking(seq, seed=1234,
                       mask_prob=MASK_PROB,
                       mask_token_id=MASK_TOKEN_ID,
                       mask_ignored_ids=MASK_IGNORED_IDS,
                       training=True)
    out = jax.block_until_ready(out)

    assert out.shape == seq.shape and out.dtype == seq.dtype
    changed = out != seq
    assert int(jnp.sum(changed)) > 0
    # Only changed positions hold the mask token.
    assert bool(jnp.all(jnp.where(changed, out == MASK_TOKEN_ID, True)))
    # Ignored ids are never masked.
    for iid in MASK_IGNORED_IDS:
        assert bool(jnp.all(jnp.where(seq == iid, out == seq, True)))
    # Empirical mask rate is close to mask_prob on maskable tokens.
    maskable = jnp.ones_like(seq, dtype=bool)
    for iid in MASK_IGNORED_IDS:
        maskable &= seq != iid
    rate = float(jnp.sum(changed)) / float(jnp.sum(maskable))
    assert 0.15 < rate < 0.35, rate

    # Case 2: fallback 2-D path (S not a multiple of 128).
    B2, S2 = 8, 130
    seq2 = jax.random.randint(k2, (B2, S2), minval=0, maxval=VOCAB, dtype=jnp.int32)
    seq2 = seq2.at[:, 0].set(101).at[:, 1].set(0)
    out2 = jax.block_until_ready(
        text_masking(seq2, seed=7, mask_prob=MASK_PROB,
                     mask_token_id=MASK_TOKEN_ID,
                     mask_ignored_ids=MASK_IGNORED_IDS, training=True))
    changed2 = out2 != seq2
    assert int(jnp.sum(changed2)) > 0
    assert bool(jnp.all(jnp.where(changed2, out2 == MASK_TOKEN_ID, True)))
    for iid in MASK_IGNORED_IDS:
        assert bool(jnp.all(jnp.where(seq2 == iid, out2 == seq2, True)))

    # Eval mode / mask_prob == 0 returns the input unchanged.
    same = text_masking(seq, seed=1, mask_prob=MASK_PROB,
                        mask_token_id=MASK_TOKEN_ID,
                        mask_ignored_ids=MASK_IGNORED_IDS, training=False)
    assert same is seq

    print("KERNEL_OK")
</pallas_src>

<mosaic_0001>
module attributes {stable_mosaic.version = 11 : i64} {
  func.func @_text_masking_kernel(%arg0: i32, %arg1: i32, %arg2: memref<1xi32, #tpu.memory_space<smem>>, %arg3: memref<24x256xi32, #tpu.memory_space<vmem>>, %arg4: memref<24x256xi32, #tpu.memory_space<vmem>>) attributes {dimension_semantics = [#tpu.dimension_semantics<parallel>, #tpu.dimension_semantics<parallel>], iteration_bounds = array<i64: 1, 1>, scalar_prefetch = 1 : i64, scratch_operands = 0 : i64, tpu.core_type = #tpu.core_type<tc>, window_params = [{transform_indices = @transform_0, window_bounds = array<i64: 24, 256>}, {transform_indices = @transform_1, window_bounds = array<i64: 24, 256>}]} {
    %c0 = arith.constant 0 : index
    %c0_0 = arith.constant 0 : index
    %0 = vector.load %arg3[%c0, %c0_0] : memref<24x256xi32, #tpu.memory_space<vmem>>, vector<24x256xi32>
    %c24_i32 = arith.constant 24 : i32
    %1 = arith.muli %arg0, %c24_i32 : i32
    %c256_i32 = arith.constant 256 : i32
    %2 = arith.muli %1, %c256_i32 : i32
    %c256_i32_1 = arith.constant 256 : i32
    %3 = arith.muli %arg1, %c256_i32_1 : i32
    %4 = arith.addi %2, %3 : i32
    %c0_2 = arith.constant 0 : index
    %5 = memref.load %arg2[%c0_2] : memref<1xi32, #tpu.memory_space<smem>>
    %6 = tpu.iota {dimensions = array<i32: 0>} : vector<24x256xi32>
    %7 = tpu.iota {dimensions = array<i32: 1>} : vector<24x256xi32>
    %c8_i32 = arith.constant 8 : i32
    %8 = vector.broadcast %c8_i32 : i32 to vector<24x256xi32>
    %9 = arith.shli %6, %8 : vector<24x256xi32>
    %10 = arith.addi %9, %7 : vector<24x256xi32>
    %11 = vector.broadcast %4 : i32 to vector<24x256xi32>
    %12 = arith.addi %10, %11 : vector<24x256xi32>
    %c16_i32 = arith.constant 16 : i32
    %13 = vector.broadcast %c16_i32 : i32 to vector<24x256xi32>
    %14 = arith.shrui %12, %13 : vector<24x256xi32>
    %15 = arith.xori %12, %14 : vector<24x256xi32>
    %c-2048144789_i32 = arith.constant -2048144789 : i32
    %16 = vector.broadcast %c-2048144789_i32 : i32 to vector<24x256xi32>
    %17 = arith.muli %15, %16 : vector<24x256xi32>
    %18 = vector.broadcast %5 : i32 to vector<24x256xi32>
    %19 = arith.xori %17, %18 : vector<24x256xi32>
    %c13_i32 = arith.constant 13 : i32
    %20 = vector.broadcast %c13_i32 : i32 to vector<24x256xi32>
    %21 = arith.shrui %19, %20 : vector<24x256xi32>
    %22 = arith.xori %19, %21 : vector<24x256xi32>
    %c-1028477387_i32 = arith.constant -1028477387 : i32
    %23 = vector.broadcast %c-1028477387_i32 : i32 to vector<24x256xi32>
    %24 = arith.muli %22, %23 : vector<24x256xi32>
    %c8_i32_3 = arith.constant 8 : i32
    %25 = vector.broadcast %c8_i32_3 : i32 to vector<24x256xi32>
    %26 = arith.shrui %24, %25 : vector<24x256xi32>
    %c4194304_i32 = arith.constant 4194304 : i32
    %27 = vector.broadcast %c4194304_i32 : i32 to vector<24x256xi32>
    %28 = arith.cmpi slt, %26, %27 : vector<24x256xi32>
    %c0_i32 = arith.constant 0 : i32
    %29 = vector.broadcast %c0_i32 : i32 to vector<24x256xi32>
    %30 = arith.cmpi ne, %0, %29 : vector<24x256xi32>
    %31 = arith.andi %28, %30 : vector<24x256xi1>
    %c101_i32 = arith.constant 101 : i32
    %32 = vector.broadcast %c101_i32 : i32 to vector<24x256xi32>
    %33 = arith.subi %0, %32 : vector<24x256xi32>
    %34 = tpu.bitcast %33 : vector<24x256xi32> -> vector<24x256xi32>
    %c1_i32 = arith.constant 1 : i32
    %35 = vector.broadcast %c1_i32 : i32 to vector<24x256xi32>
    %36 = arith.cmpi ugt, %34, %35 : vector<24x256xi32>
    %37 = arith.andi %31, %36 : vector<24x256xi1>
    %c103_i32 = arith.constant 103 : i32
    %38 = vector.broadcast %c103_i32 : i32 to vector<24x256xi32>
    %39 = arith.select %37, %38, %0 : vector<24x256xi1>, vector<24x256xi32>
    %c0_4 = arith.constant 0 : index
    %c0_5 = arith.constant 0 : index
    %40 = vector.load %arg4[%c0_4, %c0_5] : memref<24x256xi32, #tpu.memory_space<vmem>>, vector<24x256xi32>
    tpu.vector_store %arg4[%c0_4, %c0_5], %39 {strides = array<i32>} : memref<24x256xi32, #tpu.memory_space<vmem>>, vector<24x256xi32>,
    return
  }
  func.func @transform_0(%arg0: i32, %arg1: i32, %arg2: memref<1xi32, #tpu.memory_space<smem>>) -> (i32, i32) {
    %c0_i32 = arith.constant 0 : i32
    return %arg0, %arg1 : i32, i32
  }
  func.func @transform_1(%arg0: i32, %arg1: i32, %arg2: memref<1xi32, #tpu.memory_space<smem>>) -> (i32, i32) {
    %c0_i32 = arith.constant 0 : i32
    return %arg0, %arg1 : i32, i32
  }
}

</mosaic_0001>

<llo_original>
// kernel: tpu_custom_call.1
$region0: #{tpu_custom_call.1}
  #allocation0 [shape = 'u32[]', space=smem, size = 0x4, offset = 0x4, fixed_abs, tag = 'smem constant byte address 0x4 - core index']
  #allocation1 [shape = 'u32[144,128]{1,0:T(1,128)}', space=vmem, size = 0x12000, scoped, tag = 'internal scratch']
  #allocation2 [shape = 's32[1]{0}', space=sflag, size = 0x4, scoped, tag = 'scoped memory for tpu_custom_call.1']
  #allocation3 [shape = 's32[1]{0:T(128)S(6)}', space=smem, size = 0x200, scoped, tag = 'prefetched SMEM operand 0']
  %s0 = inlined_call_operand.<no memory space> [shape: s32[1], index: 0, kind: input, shape index: {}]
  %s1 = inlined_call_operand.hbm [shape: s32[24,256], index: 1, kind: input, shape index: {}]
  %s2 = inlined_call_operand.hbm [shape: s32[24,256], index: 2, kind: output, shape index: {}]
  %s3 = sld [smem:[#allocation0]]
  $region18: #{tpu_custom_call.1} parent=0
    _
  %s5 = ssub.s32 1, %s3
  %s6 = scalar_select 0, %s5, %s3
  %7 = sst [smem:[#allocation3]] %s0
  $region1: #{tpu_custom_call.1} parent=0
    #allocation4 [shape = 'u8[24576]{0}', space=vmem, size = 0x6000, scoped, tag = 'input window, operand 1, single buffered']
    #allocation5 [shape = 's32[1]{0}', space=sflag, size = 0x4, scoped, tag = 'scoped memory for tpu_custom_call.1']
    #allocation6 [shape = 's32[1]{0}', space=sflag, size = 0x4, scoped, tag = 'scoped memory for tpu_custom_call.1']
    #allocation7 [shape = 'u8[24576]{0}', space=vmem, size = 0x6000, scoped, tag = 'output window, operand 0, single buffered']
    %8 = vsyncpa [#allocation5], 0
    %9 = vsyncpa [#allocation6], 0
    // Predicated region
    $region2: #{tpu_custom_call.1} parent=1 // pred_check
      _
    $region3: #{tpu_custom_call.1} parent=1 // pred_check_branch
      %11 = sbr.rel (0) target = $region5
    $region4: #{tpu_custom_call.1} parent=1 // pred_region
      %s13 = ssub.s32 768, 768
      %14 = vsyncadd [#allocation5], %s13
      %s15 = sshll.u32 [#allocation4], 4
      %s16 = int_to_ptr.vmem [resolvable:$true] %s15
      %21 = dma.hbm_to_vmem [thread:$0]  %s1, 768, %s16, [#allocation5], 256, 256, 16
    $region5: #{tpu_custom_call.1} parent=1 // pred_fallthru
      _
    // Predicated region
    $region6: #{tpu_custom_call.1} parent=1 // pred_check
      _
    $region7: #{tpu_custom_call.1} parent=1 // pred_check_branch
      %23 = sbr.rel (0) target = $region9
    $region8: #{tpu_custom_call.1} parent=1 // pred_region
      %24 = dma.done [#allocation5], 768
    $region9: #{tpu_custom_call.1} parent=1 // pred_fallthru
      _
    %v25 = vld [vmem:[#allocation4] sm:$0xff]
    %v26 = vld [vmem:[#allocation4 + $0x8] sm:$0xff]
    %v27 = vld [vmem:[#allocation4 + $0x10] sm:$0xff]
    %v28 = vld [vmem:[#allocation4 + $0x18] sm:$0xff]
    %v29 = vld [vmem:[#allocation4 + $0x20] sm:$0xff]
    %v30 = vld [vmem:[#allocation4 + $0x28] sm:$0xff]
    %s31 = smul.u32 0, 6144
    %s32 = smul.u32 0, 256
    %s33 = sadd.s32 %s31, %s32
    %s34 = sld [smem:[#allocation3]]
    %v35 = vlaneseq
    %v36 = vshrl.u32 %v35, 7
    %v37 = vadd.s32 %v36, 8
    %v38 = vadd.s32 %v36, 16
    %v39 = vlaneseq
    %v40 = vand.u32 %v39, 127
    %v41 = vadd.s32 %v40, 128
    %v42 = vshll.u32 %v36, 8
    %v43 = vshll.u32 %v37, 8
    %v44 = vshll.u32 %v38, 8
    %v45 = vadd.s32 %v42, %v40
    %v46 = vadd.s32 %v42, %v41
    %v47 = vadd.s32 %v43, %v40
    %v48 = vadd.s32 %v43, %v41
    %v49 = vadd.s32 %v44, %v40
    %v50 = vadd.s32 %v44, %v41
    %v51 = vstv %s33
    %v52 = vadd.s32 %v45, %v51
    %v53 = vadd.s32 %v46, %v51
    %v54 = vadd.s32 %v47, %v51
    %v55 = vadd.s32 %v48, %v51
    %v56 = vadd.s32 %v49, %v51
    %v57 = vadd.s32 %v50, %v51
    %v58 = vshrl.u32 %v52, 16
    %v59 = vshrl.u32 %v53, 16
    %v60 = vshrl.u32 %v54, 16
    %v61 = vshrl.u32 %v55, 16
    %v62 = vshrl.u32 %v56, 16
    %v63 = vshrl.u32 %v57, 16
    %v64 = vxor.u32 %v52, %v58
    %v65 = vxor.u32 %v53, %v59
    %v66 = vxor.u32 %v54, %v60
    %v67 = vxor.u32 %v55, %v61
    %v68 = vxor.u32 %v56, %v62
    %v69 = vxor.u32 %v57, %v63
    %v70 = vmul.u32 %v64, 2246822507
    %v71 = vmul.u32 %v65, 2246822507
    %v72 = vmul.u32 %v66, 2246822507
    %v73 = vmul.u32 %v67, 2246822507
    %v74 = vmul.u32 %v68, 2246822507
    %v75 = vmul.u32 %v69, 2246822507
    %v76 = vstv %s34
    %v77 = vxor.u32 %v70, %v76
    %v78 = vxor.u32 %v71, %v76
    %v79 = vxor.u32 %v72, %v76
    %v80 = vxor.u32 %v73, %v76
    %v81 = vxor.u32 %v74, %v76
    %v82 = vxor.u32 %v75, %v76
    %v83 = vshrl.u32 %v77, 13
    %v84 = vshrl.u32 %v78, 13
    %v85 = vshrl.u32 %v79, 13
    %v86 = vshrl.u32 %v80, 13
    %v87 = vshrl.u32 %v81, 13
    %v88 = vshrl.u32 %v82, 13
    %v89 = vxor.u32 %v77, %v83
    %v90 = vxor.u32 %v78, %v84
    %v91 = vxor.u32 %v79, %v85
    %v92 = vxor.u32 %v80, %v86
    %v93 = vxor.u32 %v81, %v87
    %v94 = vxor.u32 %v82, %v88
    %v95 = vmul.u32 %v89, 3266489909
    %v96 = vmul.u32 %v90, 3266489909
    %v97 = vmul.u32 %v91, 3266489909
    %v98 = vmul.u32 %v92, 3266489909
    %v99 = vmul.u32 %v93, 3266489909
    %v100 = vmul.u32 %v94, 3266489909
    %v101 = vshrl.u32 %v95, 8
    %v102 = vshrl.u32 %v96, 8
    %v103 = vshrl.u32 %v97, 8
    %v104 = vshrl.u32 %v98, 8
    %v105 = vshrl.u32 %v99, 8
    %v106 = vshrl.u32 %v100, 8
    %vm107 = vcmp.lt.s32.totalorder %v101, 4194304
    %vm108 = vcmp.lt.s32.totalorder %v102, 4194304
    %vm109 = vcmp.lt.s32.totalorder %v103, 4194304
    %vm110 = vcmp.lt.s32.totalorder %v104, 4194304
    %vm111 = vcmp.lt.s32.totalorder %v105, 4194304
    %vm112 = vcmp.lt.s32.totalorder %v106, 4194304
    %vm113 = vcmp.ne.s32.totalorder %v25, 0
    %vm114 = vcmp.ne.s32.totalorder %v26, 0
    %vm115 = vcmp.ne.s32.totalorder %v27, 0
    %vm116 = vcmp.ne.s32.totalorder %v28, 0
    %vm117 = vcmp.ne.s32.totalorder %v29, 0
    %vm118 = vcmp.ne.s32.totalorder %v30, 0
    %vm119 = vmand %vm107, %vm113
    %vm120 = vmand %vm108, %vm114
    %vm121 = vmand %vm109, %vm115
    %vm122 = vmand %vm110, %vm116
    %vm123 = vmand %vm111, %vm117
    %vm124 = vmand %vm112, %vm118
    %v125 = vsub.s32 %v25, 101
    %v126 = vsub.s32 %v26, 101
    %v127 = vsub.s32 %v27, 101
    %v128 = vsub.s32 %v28, 101
    %v129 = vsub.s32 %v29, 101
    %v130 = vsub.s32 %v30, 101
    %vm131 = vcmp.gt.u32.totalorder %v125, 1
    %vm132 = vcmp.gt.u32.totalorder %v126, 1
    %vm133 = vcmp.gt.u32.totalorder %v127, 1
    %vm134 = vcmp.gt.u32.totalorder %v128, 1
    %vm135 = vcmp.gt.u32.totalorder %v129, 1
    %vm136 = vcmp.gt.u32.totalorder %v130, 1
    %vm137 = vmand %vm119, %vm131
    %vm138 = vmand %vm120, %vm132
    %vm139 = vmand %vm121, %vm133
    %vm140 = vmand %vm122, %vm134
    %vm141 = vmand %vm123, %vm135
    %vm142 = vmand %vm124, %vm136
    %v143 = vsel %vm137, 103, %v25
    %v144 = vsel %vm138, 103, %v26
    %v145 = vsel %vm139, 103, %v27
    %v146 = vsel %vm140, 103, %v28
    %v147 = vsel %vm141, 103, %v29
    %v148 = vsel %vm142, 103, %v30
    %149 = vst [vmem:[#allocation7] sm:$0xff] %v143
    %150 = vst [vmem:[#allocation7 + $0x8] sm:$0xff] %v144
    %151 = vst [vmem:[#allocation7 + $0x10] sm:$0xff] %v145
    %152 = vst [vmem:[#allocation7 + $0x18] sm:$0xff] %v146
    %153 = vst [vmem:[#allocation7 + $0x20] sm:$0xff] %v147
    %154 = vst [vmem:[#allocation7 + $0x28] sm:$0xff] %v148
    // Predicated region
    $region10: #{tpu_custom_call.1} parent=1 // pred_check
      _
    $region11: #{tpu_custom_call.1} parent=1 // pred_check_branch
      %156 = sbr.rel (0) target = $region13
    $region12: #{tpu_custom_call.1} parent=1 // pred_region
      %s158 = ssub.s32 768, 768
      %159 = vsyncadd [#allocation6], %s158
      %s160 = sshll.u32 [#allocation7], 4
      %s161 = int_to_ptr.vmem [resolvable:$true] %s160
      %166 = dma.vmem_to_hbm [thread:$0]  %s161, 768, %s2, [#allocation6], 256, 256, 16
    $region13: #{tpu_custom_call.1} parent=1 // pred_fallthru
      _
    // Predicated region
    $region14: #{tpu_custom_call.1} parent=1 // pred_check
      _
    $region15: #{tpu_custom_call.1} parent=1 // pred_check_branch
      %168 = sbr.rel (0) target = $region17
    $region16: #{tpu_custom_call.1} parent=1 // pred_region
      %169 = dma.done [#allocation6], 768
    $region17: #{tpu_custom_call.1} parent=1 // pred_fallthru
      _
    %170 = vsyncpa [#allocation5], 1
    %171 = vsyncpa [#allocation6], 1

</llo_original>
